<compile_context>
chip_gen: v7x
topology: tpu7x:2x2x1
jax: 0.10.0
libtpu: 0.0.40
codegen_flags: <defaults>
</compile_context>

<pallas_src>
import jax
import jax.numpy as jnp
import numpy as np
from jax.experimental import pallas as pl
from jax.experimental.pallas import tpu as pltpu


# ----------------------------------------------------------------------------
# Kernel: one fused tile of  relu(x @ W1 + b1) @ W2 + b2
# ----------------------------------------------------------------------------
def _gaussian_head_kernel(x_ref, w1_ref, b1_ref, w2_ref, b2_ref, out_ref):
    # phi body: Linear + ReLU.  f32 accumulation, f32 bias/ReLU (v5e-safe).
    h = jnp.dot(x_ref[...], w1_ref[...], preferred_element_type=jnp.float32)
    h = jnp.maximum(h + b1_ref[...], 0.0)
    # head: single Linear(phi_out, 2*output_dim), output_activation='none'.
    out = jnp.dot(h.astype(w2_ref.dtype), w2_ref[...],
                  preferred_element_type=jnp.float32) + b2_ref[...]
    # Single fused, lane-dense store; mean/log_std split happens outside.
    out_ref[...] = out.astype(out_ref.dtype)


# ----------------------------------------------------------------------------
# One-time parameter prep: block-diagonal lane packing.
# ----------------------------------------------------------------------------
def pack_gaussian_head_params(w1, b1, w2, b2, output_dim, *, pack=None,
                              param_dtype=None):
    """Replicate both Linear layers block-diagonally so that `pack` batch rows
    travel side-by-side in the 128-lane dimension.  Do this once and reuse."""
    in_dim, phi_out = w1.shape
    head_out = w2.shape[1]
    assert head_out == 2 * output_dim

    if pack is None:
        widest = max(in_dim, phi_out)
        pack = max(1, 128 // widest)          # rows that fit into 128 lanes
    if param_dtype is None:
        param_dtype = w1.dtype                # pass bf16 weights for bf16 I/O

    b1 = jnp.asarray(b1, jnp.float32).reshape(1, phi_out)
    b2 = jnp.asarray(b2, jnp.float32).reshape(1, head_out)

    if pack == 1:
        W1, B1 = w1.astype(param_dtype), b1
        W2, B2 = w2.astype(param_dtype), b2
    else:
        eye = jnp.eye(pack, dtype=param_dtype)
        W1 = jnp.kron(eye, w1.astype(param_dtype))   # (pack*in,  pack*phi)
        W2 = jnp.kron(eye, w2.astype(param_dtype))   # (pack*phi, pack*2D)
        B1 = jnp.tile(b1, (1, pack))
        B2 = jnp.tile(b2, (1, pack))

    return dict(pack=pack, output_dim=output_dim,
                W1=W1, B1=B1, W2=W2, B2=B2,
                w1=w1, b1=b1, w2=w2, b2=b2)          # raw copies for fallback


def _default_block_rows(row_bytes):
    """Per-generation batch-tile sizing (bigger VMEM -> bigger tile)."""
    try:
        capacity = int(pltpu.get_tpu_info().vmem_capacity_bytes)
    except Exception:                      # query unavailable -> be conservative
        capacity = 64 * 2**20              # v7x per-TensorCore VMEM
    if capacity >= 128 * 2**20:            # v5e / v6e
        tile_budget, limit_cap = 48 * 2**20, 100 * 2**20
    else:                                  # v7x (64 MiB / core) or unknown
        tile_budget, limit_cap = 20 * 2**20, 52 * 2**20
    rows = max(8, tile_budget // max(row_bytes, 1))
    return int(min(rows, 32768)), limit_cap


# ----------------------------------------------------------------------------
# Forward wrapper
# ----------------------------------------------------------------------------
def gaussian_head_forward(x, params, *, out_dtype=jnp.float32,
                          block_rows=None, min_pallas_rows=2048):
    """Fused GaussianHead forward.  Returns (mean, log_std)."""
    output_dim = params["output_dim"]
    head_out = 2 * output_dim
    pack = params["pack"]
    B, in_dim = x.shape

    # Small-batch / ragged-pack fallback: at RL-step batch sizes the fused XLA
    # dots are already at roofline; the pallas_call launch overhead dominates.
    if (min_pallas_rows and B < min_pallas_rows) or (B % pack != 0):
        h = jnp.maximum(x @ params["w1"] + params["b1"], 0.0)
        out = (h @ params["w2"] + params["b2"]).astype(out_dtype)
        return out[:, :output_dim], out[:, output_dim:]

    W1, B1, W2, B2 = params["W1"], params["B1"], params["W2"], params["B2"]
    P_in, P_hid = W1.shape
    P_out = W2.shape[1]
    assert P_in == pack * in_dim and P_out == pack * head_out
    B_packed = B // pack

    # Free contiguous view: `pack` consecutive rows fold into lanes.
    xp = x.reshape(B_packed, P_in)

    # ---- per-chip batch-tile sizing ----------------------------------------
    def lane_pad(n):
        return ((n + 127) // 128) * 128

    x_row = lane_pad(P_in) * x.dtype.itemsize
    o_row = lane_pad(P_out) * np.dtype(out_dtype).itemsize
    h_row = lane_pad(P_hid) * 4
    row_bytes = 2 * (x_row + o_row) + h_row          # dbl-buffered I/O + temp

    if block_rows is None:
        block_rows, limit_cap = _default_block_rows(row_bytes)
    else:
        limit_cap = 52 * 2**20
    block_rows = min(block_rows, B_packed)
    if block_rows < B_packed:
        block_rows = max(8, (block_rows // 8) * 8)   # sublane-aligned tile
    grid = (pl.cdiv(B_packed, block_rows),)          # ragged last block masked

    weights_nbytes = sum(a.size * a.dtype.itemsize for a in (W1, B1, W2, B2))
    needed = block_rows * row_bytes + weights_nbytes
    vmem_limit = int(min(limit_cap, max(needed + 8 * 2**20, 32 * 2**20)))

    # Advisory cost hint (real dtypes, unpadded HBM traffic).
    flops = 2 * B_packed * (P_in * P_hid + P_hid * P_out)
    bytes_accessed = (B_packed * P_in * x.dtype.itemsize
                      + B_packed * P_out * np.dtype(out_dtype).itemsize
                      + weights_nbytes)
    cost = pl.CostEstimate(flops=flops, transcendentals=0,
                           bytes_accessed=bytes_accessed)

    out_packed = pl.pallas_call(
        _gaussian_head_kernel,
        out_shape=jax.ShapeDtypeStruct((B_packed, P_out), out_dtype),
        grid=grid,
        in_specs=[
            # Activations: tiled over (packed) batch rows.
            pl.BlockSpec((block_rows, P_in), lambda i: (i, 0)),
            # Weights / biases: resident across the whole grid.
            pl.BlockSpec((P_in, P_hid), lambda i: (0, 0)),
            pl.BlockSpec((1, P_hid), lambda i: (0, 0)),
            pl.BlockSpec((P_hid, P_out), lambda i: (0, 0)),
            pl.BlockSpec((1, P_out), lambda i: (0, 0)),
        ],
        out_specs=pl.BlockSpec((block_rows, P_out), lambda i: (i, 0)),
        compiler_params=pltpu.CompilerParams(
            dimension_semantics=("parallel",),       # 2-TC split on v7x
            vmem_limit_bytes=vmem_limit),
        cost_estimate=cost,
    )(xp, W1, B1, W2, B2)

    out = out_packed.reshape(B, head_out)            # free contiguous view
    # TODO(synk): sample()/log_prob()/entropy() use torch.distributions.Normal
    # (rsample, clamp, sum) — distribution sampling stays in plain JAX outside
    # the kernel.  Returning `out` fused would also avoid the two slices below
    # if the consumer allows it; the split is kept here for API parity.
    return out[:, :output_dim], out[:, output_dim:]


if __name__ == "__main__":
    # Small shapes consistent with the module: batch=8, phi input 32,
    # phi.output_dim=32, GaussianHead output_dim=8 -> head emits 16 units.
    B, in_dim, phi_out, output_dim = 8, 32, 32, 8

    key = jax.random.PRNGKey(0)
    kx, kw1, kw2 = jax.random.split(key, 3)

    x = jax.random.normal(kx, (B, in_dim), dtype=jnp.float32)

    # phi Body: Linear(in_dim, phi_out) + ReLU, fan-in uniform init.
    bound1 = 1.0 / jnp.sqrt(jnp.float32(in_dim))
    w1 = jax.random.uniform(kw1, (in_dim, phi_out), jnp.float32,
                            minval=-bound1, maxval=bound1)
    b1 = jnp.zeros((phi_out,), jnp.float32)

    # head layer: Linear(phi_out, 2*output_dim) with ops.uniform_init.
    w2 = jax.random.uniform(kw2, (phi_out, 2 * output_dim), jnp.float32,
                            minval=-3e-3, maxval=3e-3)
    b2 = jnp.zeros((2 * output_dim,), jnp.float32)

    # One-time prep: block-diagonal lane packing (pack=4 here: 4*32 = 128).
    params = pack_gaussian_head_params(w1, b1, w2, b2, output_dim)

    # min_pallas_rows=0 forces the Pallas path at this tiny demo batch;
    # production RL loops keep the default small-batch XLA fallback.
    mean, log_std = gaussian_head_forward(x, params, min_pallas_rows=0)
    jax.block_until_ready((mean, log_std))

    # Pure-JAX reference of the forward semantics.
    h_ref = jnp.maximum(x @ w1 + b1.reshape(1, -1), 0.0)
    out_ref = h_ref @ w2 + b2.reshape(1, -1)
    assert mean.shape == (B, output_dim) and log_std.shape == (B, output_dim)
    assert jnp.allclose(mean, out_ref[:, :output_dim], atol=1e-5)
    assert jnp.allclose(log_std, out_ref[:, output_dim:], atol=1e-5)
    print("KERNEL_OK")
</pallas_src>

<mosaic_0001>
module attributes {stable_mosaic.version = 11 : i64} {
  func.func @_gaussian_head_kernel(%arg0: i32, %arg1: memref<2x128xf32, #tpu.memory_space<vmem>>, %arg2: memref<128x128xf32, #tpu.memory_space<vmem>>, %arg3: memref<1x128xf32, #tpu.memory_space<vmem>>, %arg4: memref<128x64xf32, #tpu.memory_space<vmem>>, %arg5: memref<1x64xf32, #tpu.memory_space<vmem>>, %arg6: memref<2x64xf32, #tpu.memory_space<vmem>>) attributes {dimension_semantics = [#tpu.dimension_semantics<parallel>], iteration_bounds = array<i64: 1>, scalar_prefetch = 0 : i64, scratch_operands = 0 : i64, tpu.core_type = #tpu.core_type<tc>, window_params = [{transform_indices = @transform_0, window_bounds = array<i64: 2, 128>}, {pipeline_mode = #tpu.pipeline_mode<synchronous>, transform_indices = @transform_1, window_bounds = array<i64: 128, 128>}, {pipeline_mode = #tpu.pipeline_mode<synchronous>, transform_indices = @transform_2, window_bounds = array<i64: 1, 128>}, {pipeline_mode = #tpu.pipeline_mode<synchronous>, transform_indices = @transform_3, window_bounds = array<i64: 128, 64>}, {pipeline_mode = #tpu.pipeline_mode<synchronous>, transform_indices = @transform_4, window_bounds = array<i64: 1, 64>}, {transform_indices = @transform_5, window_bounds = array<i64: 2, 64>}]} {
    %c0 = arith.constant 0 : index
    %c0_0 = arith.constant 0 : index
    %0 = vector.load %arg1[%c0, %c0_0] : memref<2x128xf32, #tpu.memory_space<vmem>>, vector<2x128xf32>
    %c0_1 = arith.constant 0 : index
    %c0_2 = arith.constant 0 : index
    %1 = vector.load %arg2[%c0_1, %c0_2] : memref<128x128xf32, #tpu.memory_space<vmem>>, vector<128x128xf32>
    %cst = arith.constant dense<0.000000e+00> : vector<2x128xf32>
    %2 = tpu.matmul %0, %1, %cst {dimension_numbers = #tpu.dot_dimension_numbers<[1], [0], [0], [1], [0, 0, 1, 1], [], []>} : vector<2x128xf32>, vector<128x128xf32>, vector<2x128xf32> -> vector<2x128xf32>
    %c0_3 = arith.constant 0 : index
    %c0_4 = arith.constant 0 : index
    %3 = vector.load %arg3[%c0_3, %c0_4] : memref<1x128xf32, #tpu.memory_space<vmem>>, vector<1x128xf32>
    %4 = vector.broadcast %3 : vector<1x128xf32> to vector<2x128xf32>
    %5 = arith.addf %2, %4 : vector<2x128xf32>
    %cst_5 = arith.constant 0.000000e+00 : f32
    %6 = vector.broadcast %cst_5 : f32 to vector<2x128xf32>
    %7 = arith.maximumf %5, %6 : vector<2x128xf32>
    %c0_6 = arith.constant 0 : index
    %c0_7 = arith.constant 0 : index
    %8 = vector.load %arg4[%c0_6, %c0_7] : memref<128x64xf32, #tpu.memory_space<vmem>>, vector<128x64xf32>
    %cst_8 = arith.constant dense<0.000000e+00> : vector<2x64xf32>
    %9 = tpu.matmul %7, %8, %cst_8 {dimension_numbers = #tpu.dot_dimension_numbers<[1], [0], [0], [1], [0, 0, 1, 1], [], []>} : vector<2x128xf32>, vector<128x64xf32>, vector<2x64xf32> -> vector<2x64xf32>
    %c0_9 = arith.constant 0 : index
    %c0_10 = arith.constant 0 : index
    %10 = vector.load %arg5[%c0_9, %c0_10] : memref<1x64xf32, #tpu.memory_space<vmem>>, vector<1x64xf32>
    %11 = vector.broadcast %10 : vector<1x64xf32> to vector<2x64xf32>
    %12 = arith.addf %9, %11 : vector<2x64xf32>
    %c0_11 = arith.constant 0 : index
    %c0_12 = arith.constant 0 : index
    %13 = vector.load %arg6[%c0_11, %c0_12] : memref<2x64xf32, #tpu.memory_space<vmem>>, vector<2x64xf32>
    tpu.vector_store %arg6[%c0_11, %c0_12], %12 {strides = array<i32>} : memref<2x64xf32, #tpu.memory_space<vmem>>, vector<2x64xf32>,
    return
  }
  func.func @transform_0(%arg0: i32) -> (i32, i32) {
    %c0_i32 = arith.constant 0 : i32
    %c0_i32_0 = arith.constant 0 : i32
    return %arg0, %c0_i32 : i32, i32
  }
  func.func @transform_1(%arg0: i32) -> (i32, i32) {
    %c0_i32 = arith.constant 0 : i32
    %c0_i32_0 = arith.constant 0 : i32
    %c0_i32_1 = arith.constant 0 : i32
    return %c0_i32, %c0_i32_0 : i32, i32
  }
  func.func @transform_2(%arg0: i32) -> (i32, i32) {
    %c0_i32 = arith.constant 0 : i32
    %c0_i32_0 = arith.constant 0 : i32
    %c0_i32_1 = arith.constant 0 : i32
    return %c0_i32, %c0_i32_0 : i32, i32
  }
  func.func @transform_3(%arg0: i32) -> (i32, i32) {
    %c0_i32 = arith.constant 0 : i32
    %c0_i32_0 = arith.constant 0 : i32
    %c0_i32_1 = arith.constant 0 : i32
    return %c0_i32, %c0_i32_0 : i32, i32
  }
  func.func @transform_4(%arg0: i32) -> (i32, i32) {
    %c0_i32 = arith.constant 0 : i32
    %c0_i32_0 = arith.constant 0 : i32
    %c0_i32_1 = arith.constant 0 : i32
    return %c0_i32, %c0_i32_0 : i32, i32
  }
  func.func @transform_5(%arg0: i32) -> (i32, i32) {
    %c0_i32 = arith.constant 0 : i32
    %c0_i32_0 = arith.constant 0 : i32
    return %arg0, %c0_i32 : i32, i32
  }
}

</mosaic_0001>

<llo_original>
// kernel: tpu_custom_call.1
$region0: #{tpu_custom_call.1}
  #allocation0 [shape = 'u32[]', space=smem, size = 0x4, offset = 0x4, fixed_abs, tag = 'smem constant byte address 0x4 - core index']
  #allocation1 [shape = 'u32[144,128]{1,0:T(1,128)}', space=vmem, size = 0x12000, scoped, tag = 'internal scratch']
  %s0 = inlined_call_operand.vmem [shape: f32[2,128], index: 0, kind: input, shape index: {}]
  %s1 = inlined_call_operand.vmem [shape: f32[128,128], index: 1, kind: input, shape index: {}]
  %s2 = inlined_call_operand.vmem [shape: f32[1,128], index: 2, kind: input, shape index: {}]
  %s3 = inlined_call_operand.vmem [shape: f32[128,64], index: 3, kind: input, shape index: {}]
  %s4 = inlined_call_operand.vmem [shape: f32[1,64], index: 4, kind: input, shape index: {}]
  %s5 = inlined_call_operand.hbm [shape: f32[2,64], index: 5, kind: output, shape index: {}]
  %s6 = sld [smem:[#allocation0]]
  $region30: #{tpu_custom_call.1} parent=0
    _
  %s8 = ssub.s32 1, %s6
  %s9 = scalar_select 0, %s8, %s6
  $region1: #{tpu_custom_call.1} parent=0
    #allocation2 [shape = 'u8[1024]{0}', space=vmem, size = 0x400, scoped, tag = 'output window, operand 0, single buffered']
    #allocation3 [shape = 's32[1]{0}', space=sflag, size = 0x4, scoped, tag = 'scoped memory for tpu_custom_call.1']
    %10 = vsyncpa [#allocation3], 0
    // Predicated region
    $region2: #{tpu_custom_call.1} parent=1 // pred_check
      _
    $region3: #{tpu_custom_call.1} parent=1 // pred_check_branch
      %12 = sbr.rel (0) target = $region5
    $region4: #{tpu_custom_call.1} parent=1 // pred_region
      _
    $region5: #{tpu_custom_call.1} parent=1 // pred_fallthru
      _
    // Predicated region
    $region6: #{tpu_custom_call.1} parent=1 // pred_check
      _
    $region7: #{tpu_custom_call.1} parent=1 // pred_check_branch
      %14 = sbr.rel (0) target = $region9
    $region8: #{tpu_custom_call.1} parent=1 // pred_region
      _
    $region9: #{tpu_custom_call.1} parent=1 // pred_fallthru
      _
    // Predicated region
    $region10: #{tpu_custom_call.1} parent=1 // pred_check
      _
    $region11: #{tpu_custom_call.1} parent=1 // pred_check_branch
      %16 = sbr.rel (0) target = $region13
    $region12: #{tpu_custom_call.1} parent=1 // pred_region
      _
    $region13: #{tpu_custom_call.1} parent=1 // pred_fallthru
      _
    // Predicated region
    $region14: #{tpu_custom_call.1} parent=1 // pred_check
      _
    $region15: #{tpu_custom_call.1} parent=1 // pred_check_branch
      %18 = sbr.rel (0) target = $region17
    $region16: #{tpu_custom_call.1} parent=1 // pred_region
      _
    $region17: #{tpu_custom_call.1} parent=1 // pred_fallthru
      _
    // Predicated region
    $region18: #{tpu_custom_call.1} parent=1 // pred_check
      _
    $region19: #{tpu_custom_call.1} parent=1 // pred_check_branch
      %20 = sbr.rel (0) target = $region21
    $region20: #{tpu_custom_call.1} parent=1 // pred_region
      _
    $region21: #{tpu_custom_call.1} parent=1 // pred_fallthru
      _
    %v21 = vld [vmem:[%s0] sm:$0x3]
    %v22 = vld [vmem:[%s1] sm:$0xff]
    %v23 = vld [vmem:[%s1 + $0x8] sm:$0xff]
    %v24 = vld [vmem:[%s1 + $0x10] sm:$0xff]
    %v25 = vld [vmem:[%s1 + $0x18] sm:$0xff]
    %v26 = vld [vmem:[%s1 + $0x20] sm:$0xff]
    %v27 = vld [vmem:[%s1 + $0x28] sm:$0xff]
    %v28 = vld [vmem:[%s1 + $0x30] sm:$0xff]
    %v29 = vld [vmem:[%s1 + $0x38] sm:$0xff]
    %v30 = vld [vmem:[%s1 + $0x40] sm:$0xff]
    %v31 = vld [vmem:[%s1 + $0x48] sm:$0xff]
    %v32 = vld [vmem:[%s1 + $0x50] sm:$0xff]
    %v33 = vld [vmem:[%s1 + $0x58] sm:$0xff]
    %v34 = vld [vmem:[%s1 + $0x60] sm:$0xff]
    %v35 = vld [vmem:[%s1 + $0x68] sm:$0xff]
    %v36 = vld [vmem:[%s1 + $0x70] sm:$0xff]
    %v37 = vld [vmem:[%s1 + $0x78] sm:$0xff]
    %v38 = vld [vmem:[%s2] sm:$0x1]
    %v40 = vlaneseq
    %v41 = vshrl.u32 %v40, 7
    %v42 = vsub.s32 0, %v41
    %v43 = vrot.slane %v38, %v42
    %45 = vmatprep.subr.mxu0 0.0
    %46 = vmatpush1.msra.mxu0 %v22
    %47 = vmatprep.subr.mxu0 0.0
    %48 = vmatpush1.msra.mxu0 %v23
    %49 = vmatprep.subr.mxu0 0.0
    %50 = vmatpush1.msra.mxu0 %v24
    %51 = vmatprep.subr.mxu0 0.0
    %52 = vmatpush1.msra.mxu0 %v25
    %53 = vmatprep.subr.mxu0 0.0
    %54 = vmatpush1.msra.mxu0 %v26
    %55 = vmatprep.subr.mxu0 0.0
    %56 = vmatpush1.msra.mxu0 %v27
    %57 = vmatprep.subr.mxu0 0.0
    %58 = vmatpush1.msra.mxu0 %v28
    %59 = vmatprep.subr.mxu0 0.0
    %60 = vmatpush1.msra.mxu0 %v29
    %61 = vmatprep.subr.mxu0 0.0
    %62 = vmatpush1.msra.mxu0 %v30
    %63 = vmatprep.subr.mxu0 0.0
    %64 = vmatpush1.msra.mxu0 %v31
    %65 = vmatprep.subr.mxu0 0.0
    %66 = vmatpush1.msra.mxu0 %v32
    %67 = vmatprep.subr.mxu0 0.0
    %68 = vmatpush1.msra.mxu0 %v33
    %69 = vmatprep.subr.mxu0 0.0
    %70 = vmatpush1.msra.mxu0 %v34
    %71 = vmatprep.subr.mxu0 0.0
    %72 = vmatpush1.msra.mxu0 %v35
    %73 = vmatprep.subr.mxu0 0.0
    %74 = vmatpush1.msra.mxu0 %v36
    %75 = vmatprep.subr.mxu0 0.0
    %76 = vmatpush1.msra.mxu0 %v37
    %77 = vmatprep.subr.mxu0 0.0
    %78 = vmatpush1.msra.mxu0 0.0
    %79 = vmatprep.subr.mxu0 0.0
    %80 = vmatpush1.msra.mxu0 0.0
    %81 = vmatprep.subr.mxu0 0.0
    %82 = vmatpush1.msra.mxu0 0.0
    %83 = vmatprep.subr.mxu0 0.0
    %84 = vmatpush1.msra.mxu0 0.0
    %85 = vmatprep.subr.mxu0 0.0
    %86 = vmatpush1.msra.mxu0 0.0
    %87 = vmatprep.subr.mxu0 0.0
    %88 = vmatpush1.msra.mxu0 0.0
    %89 = vmatprep.subr.mxu0 0.0
    %90 = vmatpush1.msra.mxu0 0.0
    %91 = vmatprep.subr.mxu0 0.0
    %92 = vmatpush1.msra.mxu0 0.0
    %93 = vmatprep.subr.mxu0 0.0
    %94 = vmatpush1.msra.mxu0 0.0
    %95 = vmatprep.subr.mxu0 0.0
    %96 = vmatpush1.msra.mxu0 0.0
    %97 = vmatprep.subr.mxu0 0.0
    %98 = vmatpush1.msra.mxu0 0.0
    %99 = vmatprep.subr.mxu0 0.0
    %100 = vmatpush1.msra.mxu0 0.0
    %101 = vmatprep.subr.mxu0 0.0
    %102 = vmatpush1.msra.mxu0 0.0
    %103 = vmatprep.subr.mxu0 0.0
    %104 = vmatpush1.msra.mxu0 0.0
    %105 = vmatprep.subr.mxu0 0.0
    %106 = vmatpush1.msra.mxu0 0.0
    %107 = vmatprep.subr.mxu0 0.0
    %108 = vmatpush1.msra.mxu0 0.0
    %109 = vmatprep.mubr.f32.mxu0 0.0
    %110 = vmatmul.mubr.f32.gmra.mrb[0].mxu0 %v21
    %v111 = vpop.f32.mrb[0].mxu0
    %v112 = vadd.f32 %v43, %v111
    %v113 = vpop.f32.mrb[0].mxu0
    %114 = vdwg.mxu0
    %v115 = vmax.f32 %v112, 0.0
    %v116 = vld [vmem:[%s3] sm:$0xff]
    %v117 = vld [vmem:[%s3 + $0x8] sm:$0xff]
    %v118 = vld [vmem:[%s3 + $0x10] sm:$0xff]
    %v119 = vld [vmem:[%s3 + $0x18] sm:$0xff]
    %v120 = vld [vmem:[%s3 + $0x20] sm:$0xff]
    %v121 = vld [vmem:[%s3 + $0x28] sm:$0xff]
    %v122 = vld [vmem:[%s3 + $0x30] sm:$0xff]
    %v123 = vld [vmem:[%s3 + $0x38] sm:$0xff]
    %v124 = vld [vmem:[%s3 + $0x40] sm:$0xff]
    %v125 = vld [vmem:[%s3 + $0x48] sm:$0xff]
    %v126 = vld [vmem:[%s3 + $0x50] sm:$0xff]
    %v127 = vld [vmem:[%s3 + $0x58] sm:$0xff]
    %v128 = vld [vmem:[%s3 + $0x60] sm:$0xff]
    %v129 = vld [vmem:[%s3 + $0x68] sm:$0xff]
    %v130 = vld [vmem:[%s3 + $0x70] sm:$0xff]
    %v131 = vld [vmem:[%s3 + $0x78] sm:$0xff]
    %v132 = vld [vmem:[%s4] sm:$0x1]
    %v134 = vlaneseq
    %v135 = vshrl.u32 %v134, 7
    %v136 = vsub.s32 0, %v135
    %v137 = vrot.slane %v132, %v136
    %139 = vmatprep.subr.mxu0 0.0
    %140 = vmatpush1.msra.mxu0 %v116
    %141 = vmatprep.subr.mxu0 0.0
    %142 = vmatpush1.msra.mxu0 %v117
    %143 = vmatprep.subr.mxu0 0.0
    %144 = vmatpush1.msra.mxu0 %v118
    %145 = vmatprep.subr.mxu0 0.0
    %146 = vmatpush1.msra.mxu0 %v119
    %147 = vmatprep.subr.mxu0 0.0
    %148 = vmatpush1.msra.mxu0 %v120
    %149 = vmatprep.subr.mxu0 0.0
    %150 = vmatpush1.msra.mxu0 %v121
    %151 = vmatprep.subr.mxu0 0.0
    %152 = vmatpush1.msra.mxu0 %v122
    %153 = vmatprep.subr.mxu0 0.0
    %154 = vmatpush1.msra.mxu0 %v123
    %155 = vmatprep.subr.mxu0 0.0
    %156 = vmatpush1.msra.mxu0 %v124
    %157 = vmatprep.subr.mxu0 0.0
    %158 = vmatpush1.msra.mxu0 %v125
    %159 = vmatprep.subr.mxu0 0.0
    %160 = vmatpush1.msra.mxu0 %v126
    %161 = vmatprep.subr.mxu0 0.0
    %162 = vmatpush1.msra.mxu0 %v127
    %163 = vmatprep.subr.mxu0 0.0
    %164 = vmatpush1.msra.mxu0 %v128
    %165 = vmatprep.subr.mxu0 0.0
    %166 = vmatpush1.msra.mxu0 %v129
    %167 = vmatprep.subr.mxu0 0.0
    %168 = vmatpush1.msra.mxu0 %v130
    %169 = vmatprep.subr.mxu0 0.0
    %170 = vmatpush1.msra.mxu0 %v131
    %171 = vmatprep.subr.mxu0 0.0
    %172 = vmatpush1.msra.mxu0 0.0
    %173 = vmatprep.subr.mxu0 0.0
    %174 = vmatpush1.msra.mxu0 0.0
    %175 = vmatprep.subr.mxu0 0.0
    %176 = vmatpush1.msra.mxu0 0.0
    %177 = vmatprep.subr.mxu0 0.0
    %178 = vmatpush1.msra.mxu0 0.0
    %179 = vmatprep.subr.mxu0 0.0
    %180 = vmatpush1.msra.mxu0 0.0
    %181 = vmatprep.subr.mxu0 0.0
    %182 = vmatpush1.msra.mxu0 0.0
    %183 = vmatprep.subr.mxu0 0.0
    %184 = vmatpush1.msra.mxu0 0.0
    %185 = vmatprep.subr.mxu0 0.0
    %186 = vmatpush1.msra.mxu0 0.0
    %187 = vmatprep.subr.mxu0 0.0
    %188 = vmatpush1.msra.mxu0 0.0
    %189 = vmatprep.subr.mxu0 0.0
    %190 = vmatpush1.msra.mxu0 0.0
    %191 = vmatprep.subr.mxu0 0.0
    %192 = vmatpush1.msra.mxu0 0.0
    %193 = vmatprep.subr.mxu0 0.0
    %194 = vmatpush1.msra.mxu0 0.0
    %195 = vmatprep.subr.mxu0 0.0
    %196 = vmatpush1.msra.mxu0 0.0
    %197 = vmatprep.subr.mxu0 0.0
    %198 = vmatpush1.msra.mxu0 0.0
    %199 = vmatprep.subr.mxu0 0.0
    %200 = vmatpush1.msra.mxu0 0.0
    %201 = vmatprep.subr.mxu0 0.0
    %202 = vmatpush1.msra.mxu0 0.0
    %203 = vmatprep.mubr.f32.mxu0 0.0
    %204 = vmatmul.mubr.f32.gmra.mrb[0].mxu0 %v115
    %v205 = vpop.f32.mrb[0].mxu0
    %v206 = vadd.f32 %v137, %v205
    %v207 = vpop.f32.mrb[0].mxu0
    %208 = vdwg.mxu0
    %vm209 = vcmask 517120
    %210 = vst.msk [vmem:[#allocation2] sm:$0x3] %vm209, %v206
    // Predicated region
    $region22: #{tpu_custom_call.1} parent=1 // pred_check
      _
    $region23: #{tpu_custom_call.1} parent=1 // pred_check_branch
      %212 = sbr.rel (0) target = $region25
    $region24: #{tpu_custom_call.1} parent=1 // pred_region
      %s214 = ssub.s32 32, 32
      %215 = vsyncadd [#allocation3], %s214
      %s217 = sshll.u32 [#allocation2], 4
      %s218 = int_to_ptr.vmem [resolvable:$true] %s217
      %220 = dma.vmem_to_hbm [thread:$0]  %s218, 32, %s5, [#allocation3]
    $region25: #{tpu_custom_call.1} parent=1 // pred_fallthru
      _
    // Predicated region
    $region26: #{tpu_custom_call.1} parent=1 // pred_check
      _
    $region27: #{tpu_custom_call.1} parent=1 // pred_check_branch
      %222 = sbr.rel (0) target = $region29
    $region28: #{tpu_custom_call.1} parent=1 // pred_region
      %223 = dma.done [#allocation3], 32
    $region29: #{tpu_custom_call.1} parent=1 // pred_fallthru
      _
    %224 = vsyncpa [#allocation3], 1

</llo_original>
